<compile_context>
chip_gen: v5e
topology: v5e:2x2
jax: 0.10.0
libtpu: 0.0.40
codegen_flags: <defaults>
</compile_context>

<pallas_src>
import jax
import jax.numpy as jnp
from jax.experimental import pallas as pl
from jax.experimental.pallas import tpu as pltpu


# ----------------------------------------------------------------------------
# Fused Pallas kernel
# ----------------------------------------------------------------------------

def _htautau_fused_kernel(x_hep_ref, x_cat_ref, w1c_ref, tcat_ref, b1_ref,
                          w2_ref, b2_ref, wh1_ref, bh1_ref, wh2_ref, bh2_ref,
                          consts_ref, o_ref):
    f32 = jnp.float32
    x_hep = x_hep_ref[...]          # (B, 16)  HEP-domain four-vectors
    x_cat = x_cat_ref[...]          # (B, 2)   raw category values (int32)
    B = x_hep.shape[0]

    # --- embedding lookup, folded through the first linear layer ------------
    # One-hot over the 5 embedding rows (3 choices for cat0, 2 for cat1,
    # padded to 8). tcat_ref holds emb_block @ W1_emb_block per row.
    j = jax.lax.broadcasted_iota(jnp.int32, (1, 8), 1)
    cvec0 = jnp.where(j < 3, j, -1)                            # [0,1,2,-1,...]
    cvec1 = jnp.where(j == 3, 5, jnp.where(j == 4, 7, -1))     # [-,-,-,5,7,-..]
    oh = ((x_cat[:, 0:1] == cvec0) | (x_cat[:, 1:2] == cvec1)).astype(f32)

    def elu(z):
        # exp only of the clamped negative branch -> no overflow in dead lanes
        return jnp.where(z > 0.0, z, jnp.exp(jnp.minimum(z, 0.0)) - 1.0)

    # --- MLP (standardization, bias and eval-mode BN pre-folded) ------------
    z1 = (jnp.dot(x_hep, w1c_ref[...], preferred_element_type=f32)
          + jnp.dot(oh, tcat_ref[...], preferred_element_type=f32)
          + b1_ref[...])
    h1 = elu(z1)                                                       # (B,128)
    h2 = elu(jnp.dot(h1, w2_ref[...], preferred_element_type=f32) + b2_ref[...])
    # merged head hidden layers: lanes 0:64 classification, 64:128 regression
    h3 = elu(jnp.dot(h2, wh1_ref[...], preferred_element_type=f32) + bh1_ref[...])
    # block-diagonal merged head outputs:
    #   lanes 0:5   classification logits
    #   lanes 64:70 regression (NN domain)
    #   lanes 72:78 regression (HEP domain, std/mean folded into the weights)
    z4 = jnp.dot(h3, wh2_ref[...], preferred_element_type=f32) + bh2_ref[...]

    # --- classification softmax over the 5 real logits (lane masked) --------
    lane = jax.lax.broadcasted_iota(jnp.int32, z4.shape, 1)
    logits = jnp.where(lane < 5, z4, -1e30)
    logits = logits - jnp.max(logits, axis=-1, keepdims=True)
    e = jnp.exp(logits)
    denom = jnp.sum(e, axis=-1, keepdims=True)
    y_cls = (e * pl.reciprocal(denom, approx=True))[:, 0:5]            # (B, 5)

    # --- regression outputs ---------------------------------------------------
    y_reg = z4[:, 64:70]                                               # (B, 6)
    y_reg_hep = z4[:, 72:78]                                           # (B, 6)

    # --- custom physics outputs ----------------------------------------------
    consts = consts_ref[...]                 # (2, 8): custom_mean, 1/custom_std
    dau1 = x_hep[:, 0:4]
    dau2 = x_hep[:, 4:8]
    bj1 = x_hep[:, 8:12]
    bj2 = x_hep[:, 12:16]

    def with_energy(p3):
        en = jnp.sqrt(jnp.sum(p3 * p3, axis=-1, keepdims=True))
        return jnp.concatenate([en, p3], axis=-1)

    nu1 = with_energy(y_reg_hep[:, 0:3])
    nu2 = with_energy(y_reg_hep[:, 3:6])
    tau1 = dau1 + nu1
    tau2 = dau2 + nu2
    htt = tau1 + tau2
    hbb = bj1 + bj2
    hh = htt + hbb

    eps = 1e-12

    def minv(v):                     # invariant mass, clamped against round-off
        m2 = v[:, 0:1] ** 2 - v[:, 1:2] ** 2 - v[:, 2:3] ** 2 - v[:, 3:4] ** 2
        return jnp.sqrt(jnp.maximum(m2, 0.0))

    def inv_p3norm(v):               # 1/|p3| via EUP rsqrt, eps-guarded
        n2 = v[:, 1:2] ** 2 + v[:, 2:3] ** 2 + v[:, 3:4] ** 2
        return jax.lax.rsqrt(jnp.maximum(n2, eps))

    def dot3(a, b):
        return (a[:, 1:2] * b[:, 1:2] + a[:, 2:3] * b[:, 2:3]
                + a[:, 3:4] * b[:, 3:4])

    htt_mass = minv(htt)
    htt_pt = jnp.sqrt(htt[:, 1:2] ** 2 + htt[:, 2:3] ** 2)
    r = htt[:, 3:4] * pl.reciprocal(jnp.maximum(htt_pt, eps), approx=True)
    htt_eta = jnp.log(r + jnp.sqrt(r * r + 1.0))                       # asinh(r)
    htt_gamma = htt[:, 0:1] * pl.reciprocal(jnp.maximum(htt_mass, eps),
                                            approx=True)
    htt_cos_phi = dot3(tau1, tau2) * inv_p3norm(tau1) * inv_p3norm(tau2)
    hh_mass = minv(hh)
    hh_cos_phi = dot3(htt, hbb) * inv_p3norm(htt) * inv_p3norm(hbb)

    y_custom_hep = jnp.concatenate(
        [htt_mass, htt_pt, htt_eta, htt_gamma, htt_cos_phi, hh_mass, hh_cos_phi],
        axis=-1)                                                       # (B, 7)
    y_custom = (y_custom_hep - consts[0:1, 0:7]) * consts[1:2, 0:7]

    # --- single lane-dense (B, 128) output slab (unmasked stores) -----------
    pad = jnp.zeros((B, 128 - 31), f32)
    o_ref[...] = jnp.concatenate(
        [y_cls, y_reg, y_reg_hep, y_custom, y_custom_hep, pad], axis=-1)


# ----------------------------------------------------------------------------
# Parameter construction (synthetic, deterministic) -- mirrors the PyTorch
# module layout: Linear weights stored (in, out) = transposed torch weight.
# ----------------------------------------------------------------------------

def make_params(key):
    ks = iter(jax.random.split(key, 40))

    def nk():
        return next(ks)

    n_cont = 16
    emb_dim = 4
    emb_choices = [jnp.array([0, 1, 2], jnp.int32), jnp.array([5, 7], jnp.int32)]
    emb_offsets = [0, 3]
    n_emb_rows = sum(len(c) for c in emb_choices)  # 5
    emb_weight = jax.random.normal(nk(), (n_emb_rows, emb_dim), jnp.float32) * 0.1

    x_mean = jax.random.normal(nk(), (n_cont,), jnp.float32) * 5.0
    x_std = jax.random.uniform(nk(), (n_cont,), jnp.float32, minval=20.0, maxval=60.0)

    def dense(k, fan_in, fan_out, use_bn, act):
        k1, k2, k3, k4, k5, k6 = jax.random.split(k, 6)
        w = (jax.random.normal(k1, (fan_in, fan_out), jnp.float32)
             / jnp.sqrt(jnp.float32(fan_in)))
        b = jax.random.normal(k2, (1, fan_out), jnp.float32) * 0.05
        if use_bn:
            eps = 1e-3
            rmean = jax.random.normal(k3, (1, fan_out), jnp.float32) * 0.2
            rvar = jax.random.uniform(k4, (1, fan_out), jnp.float32, 0.5, 1.5)
            gamma = jax.random.uniform(k5, (1, fan_out), jnp.float32, 0.8, 1.2)
            beta = jax.random.normal(k6, (1, fan_out), jnp.float32) * 0.1
            scale = gamma / jnp.sqrt(rvar + eps)
            shift = beta - rmean * scale
        else:
            scale = jnp.ones((1, fan_out), jnp.float32)
            shift = jnp.zeros((1, fan_out), jnp.float32)
        return (w, b, scale, shift, act)

    d_in = n_cont + len(emb_choices) * emb_dim  # 24
    hidden = 128

    common = [dense(nk(), d_in, hidden, True, "elu"),
              dense(nk(), hidden, hidden, True, "elu")]
    classification = [dense(nk(), hidden, 64, True, "elu"),
                      dense(nk(), 64, 5, False, "softmax")]
    regression = [dense(nk(), hidden, 64, True, "elu"),
                  dense(nk(), 64, 6, False, "none")]

    y_reg_mean = jnp.zeros((6,), jnp.float32)
    y_reg_std = jnp.full((6,), 20.0, jnp.float32)

    custom_mean = jnp.array([[125.0, 100.0, 0.0, 5.0, 0.0, 500.0, 0.0]], jnp.float32)
    custom_std = jnp.array([[50.0, 80.0, 2.0, 3.0, 0.7, 200.0, 0.7]], jnp.float32)

    return dict(
        emb_choices=emb_choices, emb_offsets=emb_offsets, emb_weight=emb_weight,
        x_mean=x_mean, x_std=x_std,
        common=common, classification=classification, regression=regression,
        y_reg_mean=y_reg_mean, y_reg_std=y_reg_std,
        custom_mean=custom_mean, custom_std=custom_std,
    )


# ----------------------------------------------------------------------------
# Fold all eval-mode affines into the kernel operands (exact, done once).
# ----------------------------------------------------------------------------

def fold_params(params):
    def fold(layer):
        w, b, scale, shift, _ = layer
        return w * scale, b * scale + shift          # z*sc+sh folded into W,b

    # layer 1: fold BN, input standardization and embedding table
    w1, b1 = fold(params["common"][0])                # (24,128), (1,128)
    x_mean, x_std = params["x_mean"], params["x_std"]
    w1_cont = w1[0:16, :] / x_std[:, None]
    b1 = b1 - (x_mean / x_std)[None, :] @ w1[0:16, :]
    emb = params["emb_weight"]                        # (5, 4)
    t_cat = jnp.zeros((8, 128), jnp.float32)
    t_cat = t_cat.at[0:3].set(emb[0:3] @ w1[16:20, :])
    t_cat = t_cat.at[3:5].set(emb[3:5] @ w1[20:24, :])

    w2, b2 = fold(params["common"][1])                # (128,128), (1,128)

    # merged head hidden layers: (128,128)
    wc1, bc1 = fold(params["classification"][0])
    wr1, br1 = fold(params["regression"][0])
    wh1 = jnp.concatenate([wc1, wr1], axis=1)
    bh1 = jnp.concatenate([bc1, br1], axis=1)

    # merged head output layers, block-diagonal, lane-dense:
    #   cols 0:5   cls logits, cols 64:70 y_reg (NN), cols 72:78 y_reg (HEP)
    wc2, bc2 = fold(params["classification"][1])      # (64,5), (1,5)
    wr2, br2 = fold(params["regression"][1])          # (64,6), (1,6)
    reg_std = params["y_reg_std"][None, :]
    reg_mean = params["y_reg_mean"][None, :]
    wh2 = jnp.zeros((128, 128), jnp.float32)
    wh2 = wh2.at[0:64, 0:5].set(wc2)
    wh2 = wh2.at[64:128, 64:70].set(wr2)
    wh2 = wh2.at[64:128, 72:78].set(wr2 * reg_std)
    bh2 = jnp.zeros((1, 128), jnp.float32)
    bh2 = bh2.at[:, 0:5].set(bc2)
    bh2 = bh2.at[:, 64:70].set(br2)
    bh2 = bh2.at[:, 72:78].set(br2 * reg_std + reg_mean)

    consts = jnp.ones((2, 8), jnp.float32)
    consts = consts.at[0, 0:7].set(params["custom_mean"][0])
    consts = consts.at[1, 0:7].set(1.0 / params["custom_std"][0])

    return dict(w1_cont=w1_cont, t_cat=t_cat, b1=b1, w2=w2, b2=b2,
                wh1=wh1, bh1=bh1, wh2=wh2, bh2=bh2, consts=consts)


# ----------------------------------------------------------------------------
# Forward pass: one pallas_call, slab sliced apart in the wrapper.
# ----------------------------------------------------------------------------

def htautau_forward(folded, x_cont_hep, x_cat):
    B = x_cont_hep.shape[0]
    f = folded
    slab = pl.pallas_call(
        _htautau_fused_kernel,
        out_shape=jax.ShapeDtypeStruct((B, 128), jnp.float32),
        grid=(1,),
        in_specs=[
            pl.BlockSpec((B, 16), lambda i: (0, 0)),
            pl.BlockSpec((B, 2), lambda i: (0, 0)),
            pl.BlockSpec((16, 128), lambda i: (0, 0)),
            pl.BlockSpec((8, 128), lambda i: (0, 0)),
            pl.BlockSpec((1, 128), lambda i: (0, 0)),
            pl.BlockSpec((128, 128), lambda i: (0, 0)),
            pl.BlockSpec((1, 128), lambda i: (0, 0)),
            pl.BlockSpec((128, 128), lambda i: (0, 0)),
            pl.BlockSpec((1, 128), lambda i: (0, 0)),
            pl.BlockSpec((128, 128), lambda i: (0, 0)),
            pl.BlockSpec((1, 128), lambda i: (0, 0)),
            pl.BlockSpec((2, 8), lambda i: (0, 0)),
        ],
        out_specs=pl.BlockSpec((B, 128), lambda i: (0, 0)),
        compiler_params=pltpu.CompilerParams(dimension_semantics=("arbitrary",)),
    )(x_cont_hep, x_cat.astype(jnp.int32),
      f["w1_cont"], f["t_cat"], f["b1"], f["w2"], f["b2"],
      f["wh1"], f["bh1"], f["wh2"], f["bh2"], f["consts"])

    y_cls = slab[:, 0:5]
    y_reg = slab[:, 5:11]
    y_reg_hep = slab[:, 11:17]
    y_custom = slab[:, 17:24]
    y_custom_hep = slab[:, 24:31]
    return y_cls, y_reg, y_reg_hep, y_custom, y_custom_hep


# ----------------------------------------------------------------------------
# Pure-JAX reference (unfolded, mirrors the PyTorch forward) for validation.
# ----------------------------------------------------------------------------

def htautau_reference(params, x_cont_hep, x_cat):
    x_cont = (x_cont_hep - params["x_mean"]) / params["x_std"]
    idx_cols = []
    for i, (choices, off) in enumerate(zip(params["emb_choices"],
                                           params["emb_offsets"])):
        idx = jnp.argmax(x_cat[:, i, None] == choices[None, :], axis=-1) + off
        idx_cols.append(idx)
    idx = jnp.stack(idx_cols, axis=-1)
    x_emb = params["emb_weight"][idx].reshape(x_cat.shape[0], -1)
    x = jnp.concatenate([x_cont, x_emb], axis=1)

    def elu(z):
        return jnp.where(z > 0.0, z, jnp.exp(jnp.minimum(z, 0.0)) - 1.0)

    def apply(layers, h):
        for (w, b, sc, sh, act) in layers:
            z = (h @ w + b) * sc + sh
            if act == "elu":
                h = elu(z)
            elif act == "softmax":
                h = jax.nn.softmax(z, axis=-1)
            else:
                h = z
        return h

    y_common = apply(params["common"], x)
    y_cls = apply(params["classification"], y_common)
    y_reg = apply(params["regression"], y_common)
    y_reg_hep = y_reg * params["y_reg_std"] + params["y_reg_mean"]

    def with_energy(p3):
        return jnp.concatenate(
            [jnp.sqrt(jnp.sum(p3 * p3, axis=-1, keepdims=True)), p3], axis=-1)

    dau1, dau2 = x_cont_hep[:, 0:4], x_cont_hep[:, 4:8]
    b1, b2 = x_cont_hep[:, 8:12], x_cont_hep[:, 12:16]
    nu1, nu2 = with_energy(y_reg_hep[:, 0:3]), with_energy(y_reg_hep[:, 3:6])
    tau1, tau2 = dau1 + nu1, dau2 + nu2
    htt, hbb = tau1 + tau2, b1 + b2
    hh = htt + hbb

    def minv(v):
        return jnp.sqrt(jnp.maximum(
            v[:, 0:1] ** 2 - v[:, 1:2] ** 2 - v[:, 2:3] ** 2 - v[:, 3:4] ** 2, 0.0))

    def p3n(v):
        return jnp.sqrt(v[:, 1:2] ** 2 + v[:, 2:3] ** 2 + v[:, 3:4] ** 2)

    def dot3(a, b):
        return a[:, 1:2] * b[:, 1:2] + a[:, 2:3] * b[:, 2:3] + a[:, 3:4] * b[:, 3:4]

    htt_mass = minv(htt)
    htt_pt = jnp.sqrt(htt[:, 1:2] ** 2 + htt[:, 2:3] ** 2)
    htt_eta = jnp.arcsinh(htt[:, 3:4] / htt_pt)
    htt_gamma = htt[:, 0:1] / htt_mass
    htt_cos_phi = dot3(tau1, tau2) / (p3n(tau1) * p3n(tau2))
    hh_mass = minv(hh)
    hh_cos_phi = dot3(htt, hbb) / (p3n(htt) * p3n(hbb))
    hep = jnp.concatenate(
        [htt_mass, htt_pt, htt_eta, htt_gamma, htt_cos_phi, hh_mass, hh_cos_phi],
        axis=-1)
    nn = (hep - params["custom_mean"]) / params["custom_std"]
    return y_cls, y_reg, y_reg_hep, nn, hep


# ----------------------------------------------------------------------------
# Main
# ----------------------------------------------------------------------------

if __name__ == "__main__":
    key = jax.random.PRNGKey(0)
    kp, kx, kc1, kc2 = jax.random.split(key, 4)

    params = make_params(kp)
    folded = fold_params(params)

    B = 8
    # Physically sensible four-vectors so invariant masses are real:
    # E = sqrt(|p|^2 + m^2) for dau1, dau2, bjet1, bjet2.
    p3 = jax.random.normal(kx, (B, 4, 3), jnp.float32) * 30.0
    masses = jnp.array([1.7, 1.7, 20.0, 20.0], jnp.float32)
    energy = jnp.sqrt(jnp.sum(p3 ** 2, axis=-1) + masses ** 2)          # (B, 4)
    x_cont_hep = jnp.concatenate(
        [jnp.concatenate([energy[:, i:i + 1], p3[:, i, :]], axis=1) for i in range(4)],
        axis=1)                                                          # (B, 16)

    x_cat = jnp.stack(
        [jax.random.choice(kc1, jnp.array([0, 1, 2], jnp.int32), (B,)),
         jax.random.choice(kc2, jnp.array([5, 7], jnp.int32), (B,))],
        axis=1).astype(jnp.int32)                                        # (B, 2)

    fwd = jax.jit(htautau_forward)
    outs = fwd(folded, x_cont_hep, x_cat)
    outs = jax.block_until_ready(outs)
    y_cls, y_reg, y_reg_hep, y_custom, y_custom_hep = outs

    # sanity checks
    assert y_cls.shape == (B, 5)
    assert y_reg.shape == (B, 6)
    assert y_reg_hep.shape == (B, 6)
    assert y_custom.shape == (B, 7)
    assert y_custom_hep.shape == (B, 7)
    for o in outs:
        assert bool(jnp.all(jnp.isfinite(o)))
    assert bool(jnp.allclose(jnp.sum(y_cls, axis=1), 1.0, atol=2e-2))

    # cross-check the fused/folded kernel against the unfolded pure-JAX reference
    ref_outs = htautau_reference(params, x_cont_hep, x_cat)
    for got, want in zip(outs, ref_outs):
        assert got.shape == want.shape
        assert bool(jnp.allclose(got, want, rtol=3e-2, atol=3e-2))

    print("KERNEL_OK")
</pallas_src>

<mosaic_0001>
module attributes {stable_mosaic.version = 11 : i64} {
  func.func @_htautau_fused_kernel(%arg0: i32, %arg1: memref<8x16xf32, #tpu.memory_space<vmem>>, %arg2: memref<8x2xi32, #tpu.memory_space<vmem>>, %arg3: memref<16x128xf32, #tpu.memory_space<vmem>>, %arg4: memref<8x128xf32, #tpu.memory_space<vmem>>, %arg5: memref<1x128xf32, #tpu.memory_space<vmem>>, %arg6: memref<128x128xf32, #tpu.memory_space<vmem>>, %arg7: memref<1x128xf32, #tpu.memory_space<vmem>>, %arg8: memref<128x128xf32, #tpu.memory_space<vmem>>, %arg9: memref<1x128xf32, #tpu.memory_space<vmem>>, %arg10: memref<128x128xf32, #tpu.memory_space<vmem>>, %arg11: memref<1x128xf32, #tpu.memory_space<vmem>>, %arg12: memref<2x8xf32, #tpu.memory_space<vmem>>, %arg13: memref<8x128xf32, #tpu.memory_space<vmem>>) attributes {dimension_semantics = [#tpu.dimension_semantics<arbitrary>], iteration_bounds = array<i64: 1>, scalar_prefetch = 0 : i64, scratch_operands = 0 : i64, tpu.core_type = #tpu.core_type<tc>, window_params = [{pipeline_mode = #tpu.pipeline_mode<synchronous>, transform_indices = @transform_0, window_bounds = array<i64: 8, 16>}, {pipeline_mode = #tpu.pipeline_mode<synchronous>, transform_indices = @transform_1, window_bounds = array<i64: 8, 2>}, {pipeline_mode = #tpu.pipeline_mode<synchronous>, transform_indices = @transform_2, window_bounds = array<i64: 16, 128>}, {pipeline_mode = #tpu.pipeline_mode<synchronous>, transform_indices = @transform_3, window_bounds = array<i64: 8, 128>}, {pipeline_mode = #tpu.pipeline_mode<synchronous>, transform_indices = @transform_4, window_bounds = array<i64: 1, 128>}, {pipeline_mode = #tpu.pipeline_mode<synchronous>, transform_indices = @transform_5, window_bounds = array<i64: 128, 128>}, {pipeline_mode = #tpu.pipeline_mode<synchronous>, transform_indices = @transform_6, window_bounds = array<i64: 1, 128>}, {pipeline_mode = #tpu.pipeline_mode<synchronous>, transform_indices = @transform_7, window_bounds = array<i64: 128, 128>}, {pipeline_mode = #tpu.pipeline_mode<synchronous>, transform_indices = @transform_8, window_bounds = array<i64: 1, 128>}, {pipeline_mode = #tpu.pipeline_mode<synchronous>, transform_indices = @transform_9, window_bounds = array<i64: 128, 128>}, {pipeline_mode = #tpu.pipeline_mode<synchronous>, transform_indices = @transform_10, window_bounds = array<i64: 1, 128>}, {pipeline_mode = #tpu.pipeline_mode<synchronous>, transform_indices = @transform_11, window_bounds = array<i64: 2, 8>}, {pipeline_mode = #tpu.pipeline_mode<synchronous>, transform_indices = @transform_12, window_bounds = array<i64: 8, 128>}]} {
    %c0 = arith.constant 0 : index
    %c0_0 = arith.constant 0 : index
    %0 = vector.load %arg1[%c0, %c0_0] : memref<8x16xf32, #tpu.memory_space<vmem>>, vector<8x16xf32>
    %c0_1 = arith.constant 0 : index
    %c0_2 = arith.constant 0 : index
    %1 = vector.load %arg2[%c0_1, %c0_2] : memref<8x2xi32, #tpu.memory_space<vmem>>, vector<8x2xi32>
    %2 = tpu.iota {dimensions = array<i32: 1>} : vector<1x8xi32>
    %c3_i32 = arith.constant 3 : i32
    %3 = vector.broadcast %c3_i32 : i32 to vector<1x8xi32>
    %4 = arith.cmpi slt, %2, %3 : vector<1x8xi32>
    %c-1_i32 = arith.constant -1 : i32
    %5 = vector.broadcast %c-1_i32 : i32 to vector<1x8xi32>
    %6 = arith.select %4, %2, %5 : vector<1x8xi1>, vector<1x8xi32>
    %c3_i32_3 = arith.constant 3 : i32
    %7 = vector.broadcast %c3_i32_3 : i32 to vector<1x8xi32>
    %8 = arith.cmpi eq, %2, %7 : vector<1x8xi32>
    %c4_i32 = arith.constant 4 : i32
    %9 = vector.broadcast %c4_i32 : i32 to vector<1x8xi32>
    %10 = arith.cmpi eq, %2, %9 : vector<1x8xi32>
    %c7_i32 = arith.constant 7 : i32
    %c-1_i32_4 = arith.constant -1 : i32
    %11 = vector.broadcast %c7_i32 : i32 to vector<1x8xi32>
    %12 = vector.broadcast %c-1_i32_4 : i32 to vector<1x8xi32>
    %13 = arith.select %10, %11, %12 : vector<1x8xi1>, vector<1x8xi32>
    %c5_i32 = arith.constant 5 : i32
    %14 = vector.broadcast %c5_i32 : i32 to vector<1x8xi32>
    %15 = arith.select %8, %14, %13 : vector<1x8xi1>, vector<1x8xi32>
    %16 = vector.extract_strided_slice %1 {offsets = [0, 0], sizes = [8, 1], strides = [1, 1]} : vector<8x2xi32> to vector<8x1xi32>
    %17 = vector.broadcast %16 : vector<8x1xi32> to vector<8x8xi32>
    %18 = vector.broadcast %6 : vector<1x8xi32> to vector<8x8xi32>
    %19 = arith.cmpi eq, %17, %18 : vector<8x8xi32>
    %20 = vector.extract_strided_slice %1 {offsets = [0, 1], sizes = [8, 1], strides = [1, 1]} : vector<8x2xi32> to vector<8x1xi32>
    %21 = vector.broadcast %20 : vector<8x1xi32> to vector<8x8xi32>
    %22 = vector.broadcast %15 : vector<1x8xi32> to vector<8x8xi32>
    %23 = arith.cmpi eq, %21, %22 : vector<8x8xi32>
    %24 = arith.ori %19, %23 : vector<8x8xi1>
    %25 = arith.extui %24 : vector<8x8xi1> to vector<8x8xi32>
    %26 = arith.sitofp %25 : vector<8x8xi32> to vector<8x8xf32>
    %c0_5 = arith.constant 0 : index
    %c0_6 = arith.constant 0 : index
    %27 = vector.load %arg3[%c0_5, %c0_6] : memref<16x128xf32, #tpu.memory_space<vmem>>, vector<16x128xf32>
    %cst = arith.constant dense<0.000000e+00> : vector<8x128xf32>
    %28 = tpu.matmul %0, %27, %cst {dimension_numbers = #tpu.dot_dimension_numbers<[1], [0], [0], [1], [0, 0, 1, 1], [], []>} : vector<8x16xf32>, vector<16x128xf32>, vector<8x128xf32> -> vector<8x128xf32>
    %c0_7 = arith.constant 0 : index
    %c0_8 = arith.constant 0 : index
    %29 = vector.load %arg4[%c0_7, %c0_8] : memref<8x128xf32, #tpu.memory_space<vmem>>, vector<8x128xf32>
    %cst_9 = arith.constant dense<0.000000e+00> : vector<8x128xf32>
    %30 = tpu.matmul %26, %29, %cst_9 {dimension_numbers = #tpu.dot_dimension_numbers<[1], [0], [0], [1], [0, 0, 1, 1], [], []>} : vector<8x8xf32>, vector<8x128xf32>, vector<8x128xf32> -> vector<8x128xf32>
    %31 = arith.addf %28, %30 : vector<8x128xf32>
    %c0_10 = arith.constant 0 : index
    %c0_11 = arith.constant 0 : index
    %32 = vector.load %arg5[%c0_10, %c0_11] : memref<1x128xf32, #tpu.memory_space<vmem>>, vector<1x128xf32>
    %33 = vector.broadcast %32 : vector<1x128xf32> to vector<8x128xf32>
    %34 = arith.addf %31, %33 : vector<8x128xf32>
    %cst_12 = arith.constant 0.000000e+00 : f32
    %35 = vector.broadcast %cst_12 : f32 to vector<8x128xf32>
    %36 = arith.cmpf ogt, %34, %35 : vector<8x128xf32>
    %cst_13 = arith.constant 0.000000e+00 : f32
    %37 = vector.broadcast %cst_13 : f32 to vector<8x128xf32>
    %38 = arith.minimumf %34, %37 : vector<8x128xf32>
    %39 = math.exp %38 : vector<8x128xf32>
    %cst_14 = arith.constant 1.000000e+00 : f32
    %40 = vector.broadcast %cst_14 : f32 to vector<8x128xf32>
    %41 = arith.subf %39, %40 : vector<8x128xf32>
    %42 = arith.select %36, %34, %41 : vector<8x128xi1>, vector<8x128xf32>
    %c0_15 = arith.constant 0 : index
    %c0_16 = arith.constant 0 : index
    %43 = vector.load %arg6[%c0_15, %c0_16] : memref<128x128xf32, #tpu.memory_space<vmem>>, vector<128x128xf32>
    %cst_17 = arith.constant dense<0.000000e+00> : vector<8x128xf32>
    %44 = tpu.matmul %42, %43, %cst_17 {dimension_numbers = #tpu.dot_dimension_numbers<[1], [0], [0], [1], [0, 0, 1, 1], [], []>} : vector<8x128xf32>, vector<128x128xf32>, vector<8x128xf32> -> vector<8x128xf32>
    %c0_18 = arith.constant 0 : index
    %c0_19 = arith.constant 0 : index
    %45 = vector.load %arg7[%c0_18, %c0_19] : memref<1x128xf32, #tpu.memory_space<vmem>>, vector<1x128xf32>
    %46 = vector.broadcast %45 : vector<1x128xf32> to vector<8x128xf32>
    %47 = arith.addf %44, %46 : vector<8x128xf32>
    %cst_20 = arith.constant 0.000000e+00 : f32
    %48 = vector.broadcast %cst_20 : f32 to vector<8x128xf32>
    %49 = arith.cmpf ogt, %47, %48 : vector<8x128xf32>
    %cst_21 = arith.constant 0.000000e+00 : f32
    %50 = vector.broadcast %cst_21 : f32 to vector<8x128xf32>
    %51 = arith.minimumf %47, %50 : vector<8x128xf32>
    %52 = math.exp %51 : vector<8x128xf32>
    %cst_22 = arith.constant 1.000000e+00 : f32
    %53 = vector.broadcast %cst_22 : f32 to vector<8x128xf32>
    %54 = arith.subf %52, %53 : vector<8x128xf32>
    %55 = arith.select %49, %47, %54 : vector<8x128xi1>, vector<8x128xf32>
    %c0_23 = arith.constant 0 : index
    %c0_24 = arith.constant 0 : index
    %56 = vector.load %arg8[%c0_23, %c0_24] : memref<128x128xf32, #tpu.memory_space<vmem>>, vector<128x128xf32>
    %cst_25 = arith.constant dense<0.000000e+00> : vector<8x128xf32>
    %57 = tpu.matmul %55, %56, %cst_25 {dimension_numbers = #tpu.dot_dimension_numbers<[1], [0], [0], [1], [0, 0, 1, 1], [], []>} : vector<8x128xf32>, vector<128x128xf32>, vector<8x128xf32> -> vector<8x128xf32>
    %c0_26 = arith.constant 0 : index
    %c0_27 = arith.constant 0 : index
    %58 = vector.load %arg9[%c0_26, %c0_27] : memref<1x128xf32, #tpu.memory_space<vmem>>, vector<1x128xf32>
    %59 = vector.broadcast %58 : vector<1x128xf32> to vector<8x128xf32>
    %60 = arith.addf %57, %59 : vector<8x128xf32>
    %cst_28 = arith.constant 0.000000e+00 : f32
    %61 = vector.broadcast %cst_28 : f32 to vector<8x128xf32>
    %62 = arith.cmpf ogt, %60, %61 : vector<8x128xf32>
    %cst_29 = arith.constant 0.000000e+00 : f32
    %63 = vector.broadcast %cst_29 : f32 to vector<8x128xf32>
    %64 = arith.minimumf %60, %63 : vector<8x128xf32>
    %65 = math.exp %64 : vector<8x128xf32>
    %cst_30 = arith.constant 1.000000e+00 : f32
    %66 = vector.broadcast %cst_30 : f32 to vector<8x128xf32>
    %67 = arith.subf %65, %66 : vector<8x128xf32>
    %68 = arith.select %62, %60, %67 : vector<8x128xi1>, vector<8x128xf32>
    %c0_31 = arith.constant 0 : index
    %c0_32 = arith.constant 0 : index
    %69 = vector.load %arg10[%c0_31, %c0_32] : memref<128x128xf32, #tpu.memory_space<vmem>>, vector<128x128xf32>
    %cst_33 = arith.constant dense<0.000000e+00> : vector<8x128xf32>
    %70 = tpu.matmul %68, %69, %cst_33 {dimension_numbers = #tpu.dot_dimension_numbers<[1], [0], [0], [1], [0, 0, 1, 1], [], []>} : vector<8x128xf32>, vector<128x128xf32>, vector<8x128xf32> -> vector<8x128xf32>
    %c0_34 = arith.constant 0 : index
    %c0_35 = arith.constant 0 : index
    %71 = vector.load %arg11[%c0_34, %c0_35] : memref<1x128xf32, #tpu.memory_space<vmem>>, vector<1x128xf32>
    %72 = vector.broadcast %71 : vector<1x128xf32> to vector<8x128xf32>
    %73 = arith.addf %70, %72 : vector<8x128xf32>
    %74 = tpu.iota {dimensions = array<i32: 1>} : vector<8x128xi32>
    %c5_i32_36 = arith.constant 5 : i32
    %75 = vector.broadcast %c5_i32_36 : i32 to vector<8x128xi32>
    %76 = arith.cmpi slt, %74, %75 : vector<8x128xi32>
    %cst_37 = arith.constant -1.000000e+30 : f32
    %77 = vector.broadcast %cst_37 : f32 to vector<8x128xf32>
    %78 = arith.select %76, %73, %77 : vector<8x128xi1>, vector<8x128xf32>
    %cst_38 = arith.constant dense<0xFF800000> : vector<8xf32>
    %79 = vector.multi_reduction <maximumf>, %78, %cst_38 [1] : vector<8x128xf32> to vector<8xf32>
    %80 = vector.shape_cast %79 : vector<8xf32> to vector<8x1xf32>
    %81 = vector.broadcast %80 : vector<8x1xf32> to vector<8x128xf32>
    %82 = arith.subf %78, %81 : vector<8x128xf32>
    %83 = math.exp %82 : vector<8x128xf32>
    %cst_39 = arith.constant dense<0.000000e+00> : vector<8xf32>
    %84 = vector.multi_reduction <add>, %83, %cst_39 [1] : vector<8x128xf32> to vector<8xf32>
    %85 = vector.shape_cast %84 : vector<8xf32> to vector<8x1xf32>
    %86 = tpu.reciprocal %85 {approx = true} : vector<8x1xf32> -> vector<8x1xf32>
    %87 = vector.broadcast %86 : vector<8x1xf32> to vector<8x128xf32>
    %88 = arith.mulf %83, %87 : vector<8x128xf32>
    %89 = vector.extract_strided_slice %88 {offsets = [0, 0], sizes = [8, 5], strides = [1, 1]} : vector<8x128xf32> to vector<8x5xf32>
    %90 = vector.extract_strided_slice %73 {offsets = [0, 64], sizes = [8, 6], strides = [1, 1]} : vector<8x128xf32> to vector<8x6xf32>
    %91 = vector.extract_strided_slice %73 {offsets = [0, 72], sizes = [8, 6], strides = [1, 1]} : vector<8x128xf32> to vector<8x6xf32>
    %c0_40 = arith.constant 0 : index
    %c0_41 = arith.constant 0 : index
    %92 = vector.load %arg12[%c0_40, %c0_41] : memref<2x8xf32, #tpu.memory_space<vmem>>, vector<2x8xf32>
    %93 = vector.extract_strided_slice %0 {offsets = [0, 0], sizes = [8, 4], strides = [1, 1]} : vector<8x16xf32> to vector<8x4xf32>
    %94 = vector.extract_strided_slice %0 {offsets = [0, 4], sizes = [8, 4], strides = [1, 1]} : vector<8x16xf32> to vector<8x4xf32>
    %95 = vector.extract_strided_slice %0 {offsets = [0, 8], sizes = [8, 4], strides = [1, 1]} : vector<8x16xf32> to vector<8x4xf32>
    %96 = vector.extract_strided_slice %0 {offsets = [0, 12], sizes = [8, 4], strides = [1, 1]} : vector<8x16xf32> to vector<8x4xf32>
    %97 = vector.extract_strided_slice %91 {offsets = [0, 0], sizes = [8, 3], strides = [1, 1]} : vector<8x6xf32> to vector<8x3xf32>
    %98 = arith.mulf %97, %97 : vector<8x3xf32>
    %cst_42 = arith.constant dense<0.000000e+00> : vector<8xf32>
    %99 = vector.multi_reduction <add>, %98, %cst_42 [1] : vector<8x3xf32> to vector<8xf32>
    %100 = vector.shape_cast %99 : vector<8xf32> to vector<8x1xf32>
    %101 = math.sqrt %100 : vector<8x1xf32>
    %102 = tpu.concatenate %101, %97 in 1 : vector<8x1xf32>, vector<8x3xf32> -> vector<8x4xf32>
    %103 = vector.extract_strided_slice %91 {offsets = [0, 3], sizes = [8, 3], strides = [1, 1]} : vector<8x6xf32> to vector<8x3xf32>
    %104 = arith.mulf %103, %103 : vector<8x3xf32>
    %cst_43 = arith.constant dense<0.000000e+00> : vector<8xf32>
    %105 = vector.multi_reduction <add>, %104, %cst_43 [1] : vector<8x3xf32> to vector<8xf32>
    %106 = vector.shape_cast %105 : vector<8xf32> to vector<8x1xf32>
    %107 = math.sqrt %106 : vector<8x1xf32>
    %108 = tpu.concatenate %107, %103 in 1 : vector<8x1xf32>, vector<8x3xf32> -> vector<8x4xf32>
    %109 = arith.addf %93, %102 : vector<8x4xf32>
    %110 = arith.addf %94, %108 : vector<8x4xf32>
    %111 = arith.addf %109, %110 : vector<8x4xf32>
    %112 = arith.addf %95, %96 : vector<8x4xf32>
    %113 = arith.addf %111, %112 : vector<8x4xf32>
    %114 = vector.extract_strided_slice %111 {offsets = [0, 0], sizes = [8, 1], strides = [1, 1]} : vector<8x4xf32> to vector<8x1xf32>
    %115 = arith.mulf %114, %114 : vector<8x1xf32>
    %116 = vector.extract_strided_slice %111 {offsets = [0, 1], sizes = [8, 1], strides = [1, 1]} : vector<8x4xf32> to vector<8x1xf32>
    %117 = arith.mulf %116, %116 : vector<8x1xf32>
    %118 = arith.subf %115, %117 : vector<8x1xf32>
    %119 = vector.extract_strided_slice %111 {offsets = [0, 2], sizes = [8, 1], strides = [1, 1]} : vector<8x4xf32> to vector<8x1xf32>
    %120 = arith.mulf %119, %119 : vector<8x1xf32>
    %121 = arith.subf %118, %120 : vector<8x1xf32>
    %122 = vector.extract_strided_slice %111 {offsets = [0, 3], sizes = [8, 1], strides = [1, 1]} : vector<8x4xf32> to vector<8x1xf32>
    %123 = arith.mulf %122, %122 : vector<8x1xf32>
    %124 = arith.subf %121, %123 : vector<8x1xf32>
    %cst_44 = arith.constant 0.000000e+00 : f32
    %125 = vector.broadcast %cst_44 : f32 to vector<8x1xf32>
    %126 = arith.maximumf %124, %125 : vector<8x1xf32>
    %127 = math.sqrt %126 : vector<8x1xf32>
    %128 = vector.extract_strided_slice %111 {offsets = [0, 1], sizes = [8, 1], strides = [1, 1]} : vector<8x4xf32> to vector<8x1xf32>
    %129 = arith.mulf %128, %128 : vector<8x1xf32>
    %130 = vector.extract_strided_slice %111 {offsets = [0, 2], sizes = [8, 1], strides = [1, 1]} : vector<8x4xf32> to vector<8x1xf32>
    %131 = arith.mulf %130, %130 : vector<8x1xf32>
    %132 = arith.addf %129, %131 : vector<8x1xf32>
    %133 = math.sqrt %132 : vector<8x1xf32>
    %134 = vector.extract_strided_slice %111 {offsets = [0, 3], sizes = [8, 1], strides = [1, 1]} : vector<8x4xf32> to vector<8x1xf32>
    %cst_45 = arith.constant 9.99999996E-13 : f32
    %135 = vector.broadcast %cst_45 : f32 to vector<8x1xf32>
    %136 = arith.maximumf %133, %135 : vector<8x1xf32>
    %137 = tpu.reciprocal %136 {approx = true} : vector<8x1xf32> -> vector<8x1xf32>
    %138 = arith.mulf %134, %137 : vector<8x1xf32>
    %139 = arith.mulf %138, %138 : vector<8x1xf32>
    %cst_46 = arith.constant 1.000000e+00 : f32
    %140 = vector.broadcast %cst_46 : f32 to vector<8x1xf32>
    %141 = arith.addf %139, %140 : vector<8x1xf32>
    %142 = math.sqrt %141 : vector<8x1xf32>
    %143 = arith.addf %138, %142 : vector<8x1xf32>
    %144 = math.log %143 : vector<8x1xf32>
    %145 = vector.extract_strided_slice %111 {offsets = [0, 0], sizes = [8, 1], strides = [1, 1]} : vector<8x4xf32> to vector<8x1xf32>
    %cst_47 = arith.constant 9.99999996E-13 : f32
    %146 = vector.broadcast %cst_47 : f32 to vector<8x1xf32>
    %147 = arith.maximumf %127, %146 : vector<8x1xf32>
    %148 = tpu.reciprocal %147 {approx = true} : vector<8x1xf32> -> vector<8x1xf32>
    %149 = arith.mulf %145, %148 : vector<8x1xf32>
    %150 = vector.extract_strided_slice %109 {offsets = [0, 1], sizes = [8, 1], strides = [1, 1]} : vector<8x4xf32> to vector<8x1xf32>
    %151 = vector.extract_strided_slice %110 {offsets = [0, 1], sizes = [8, 1], strides = [1, 1]} : vector<8x4xf32> to vector<8x1xf32>
    %152 = arith.mulf %150, %151 : vector<8x1xf32>
    %153 = vector.extract_strided_slice %109 {offsets = [0, 2], sizes = [8, 1], strides = [1, 1]} : vector<8x4xf32> to vector<8x1xf32>
    %154 = vector.extract_strided_slice %110 {offsets = [0, 2], sizes = [8, 1], strides = [1, 1]} : vector<8x4xf32> to vector<8x1xf32>
    %155 = arith.mulf %153, %154 : vector<8x1xf32>
    %156 = arith.addf %152, %155 : vector<8x1xf32>
    %157 = vector.extract_strided_slice %109 {offsets = [0, 3], sizes = [8, 1], strides = [1, 1]} : vector<8x4xf32> to vector<8x1xf32>
    %158 = vector.extract_strided_slice %110 {offsets = [0, 3], sizes = [8, 1], strides = [1, 1]} : vector<8x4xf32> to vector<8x1xf32>
    %159 = arith.mulf %157, %158 : vector<8x1xf32>
    %160 = arith.addf %156, %159 : vector<8x1xf32>
    %161 = vector.extract_strided_slice %109 {offsets = [0, 1], sizes = [8, 1], strides = [1, 1]} : vector<8x4xf32> to vector<8x1xf32>
    %162 = arith.mulf %161, %161 : vector<8x1xf32>
    %163 = vector.extract_strided_slice %109 {offsets = [0, 2], sizes = [8, 1], strides = [1, 1]} : vector<8x4xf32> to vector<8x1xf32>
    %164 = arith.mulf %163, %163 : vector<8x1xf32>
    %165 = arith.addf %162, %164 : vector<8x1xf32>
    %166 = vector.extract_strided_slice %109 {offsets = [0, 3], sizes = [8, 1], strides = [1, 1]} : vector<8x4xf32> to vector<8x1xf32>
    %167 = arith.mulf %166, %166 : vector<8x1xf32>
    %168 = arith.addf %165, %167 : vector<8x1xf32>
    %cst_48 = arith.constant 9.99999996E-13 : f32
    %169 = vector.broadcast %cst_48 : f32 to vector<8x1xf32>
    %170 = arith.maximumf %168, %169 : vector<8x1xf32>
    %171 = math.rsqrt %170 : vector<8x1xf32>
    %172 = arith.mulf %160, %171 : vector<8x1xf32>
    %173 = vector.extract_strided_slice %110 {offsets = [0, 1], sizes = [8, 1], strides = [1, 1]} : vector<8x4xf32> to vector<8x1xf32>
    %174 = arith.mulf %173, %173 : vector<8x1xf32>
    %175 = vector.extract_strided_slice %110 {offsets = [0, 2], sizes = [8, 1], strides = [1, 1]} : vector<8x4xf32> to vector<8x1xf32>
    %176 = arith.mulf %175, %175 : vector<8x1xf32>
    %177 = arith.addf %174, %176 : vector<8x1xf32>
    %178 = vector.extract_strided_slice %110 {offsets = [0, 3], sizes = [8, 1], strides = [1, 1]} : vector<8x4xf32> to vector<8x1xf32>
    %179 = arith.mulf %178, %178 : vector<8x1xf32>
    %180 = arith.addf %177, %179 : vector<8x1xf32>
    %cst_49 = arith.constant 9.99999996E-13 : f32
    %181 = vector.broadcast %cst_49 : f32 to vector<8x1xf32>
    %182 = arith.maximumf %180, %181 : vector<8x1xf32>
    %183 = math.rsqrt %182 : vector<8x1xf32>
    %184 = arith.mulf %172, %183 : vector<8x1xf32>
    %185 = vector.extract_strided_slice %113 {offsets = [0, 0], sizes = [8, 1], strides = [1, 1]} : vector<8x4xf32> to vector<8x1xf32>
    %186 = arith.mulf %185, %185 : vector<8x1xf32>
    %187 = vector.extract_strided_slice %113 {offsets = [0, 1], sizes = [8, 1], strides = [1, 1]} : vector<8x4xf32> to vector<8x1xf32>
    %188 = arith.mulf %187, %187 : vector<8x1xf32>
    %189 = arith.subf %186, %188 : vector<8x1xf32>
    %190 = vector.extract_strided_slice %113 {offsets = [0, 2], sizes = [8, 1], strides = [1, 1]} : vector<8x4xf32> to vector<8x1xf32>
    %191 = arith.mulf %190, %190 : vector<8x1xf32>
    %192 = arith.subf %189, %191 : vector<8x1xf32>
    %193 = vector.extract_strided_slice %113 {offsets = [0, 3], sizes = [8, 1], strides = [1, 1]} : vector<8x4xf32> to vector<8x1xf32>
    %194 = arith.mulf %193, %193 : vector<8x1xf32>
    %195 = arith.subf %192, %194 : vector<8x1xf32>
    %cst_50 = arith.constant 0.000000e+00 : f32
    %196 = vector.broadcast %cst_50 : f32 to vector<8x1xf32>
    %197 = arith.maximumf %195, %196 : vector<8x1xf32>
    %198 = math.sqrt %197 : vector<8x1xf32>
    %199 = vector.extract_strided_slice %111 {offsets = [0, 1], sizes = [8, 1], strides = [1, 1]} : vector<8x4xf32> to vector<8x1xf32>
    %200 = vector.extract_strided_slice %112 {offsets = [0, 1], sizes = [8, 1], strides = [1, 1]} : vector<8x4xf32> to vector<8x1xf32>
    %201 = arith.mulf %199, %200 : vector<8x1xf32>
    %202 = vector.extract_strided_slice %111 {offsets = [0, 2], sizes = [8, 1], strides = [1, 1]} : vector<8x4xf32> to vector<8x1xf32>
    %203 = vector.extract_strided_slice %112 {offsets = [0, 2], sizes = [8, 1], strides = [1, 1]} : vector<8x4xf32> to vector<8x1xf32>
    %204 = arith.mulf %202, %203 : vector<8x1xf32>
    %205 = arith.addf %201, %204 : vector<8x1xf32>
    %206 = vector.extract_strided_slice %111 {offsets = [0, 3], sizes = [8, 1], strides = [1, 1]} : vector<8x4xf32> to vector<8x1xf32>
    %207 = vector.extract_strided_slice %112 {offsets = [0, 3], sizes = [8, 1], strides = [1, 1]} : vector<8x4xf32> to vector<8x1xf32>
    %208 = arith.mulf %206, %207 : vector<8x1xf32>
    %209 = arith.addf %205, %208 : vector<8x1xf32>
    %210 = vector.extract_strided_slice %111 {offsets = [0, 1], sizes = [8, 1], strides = [1, 1]} : vector<8x4xf32> to vector<8x1xf32>
    %211 = arith.mulf %210, %210 : vector<8x1xf32>
    %212 = vector.extract_strided_slice %111 {offsets = [0, 2], sizes = [8, 1], strides = [1, 1]} : vector<8x4xf32> to vector<8x1xf32>
    %213 = arith.mulf %212, %212 : vector<8x1xf32>
    %214 = arith.addf %211, %213 : vector<8x1xf32>
    %215 = vector.extract_strided_slice %111 {offsets = [0, 3], sizes = [8, 1], strides = [1, 1]} : vector<8x4xf32> to vector<8x1xf32>
    %216 = arith.mulf %215, %215 : vector<8x1xf32>
    %217 = arith.addf %214, %216 : vector<8x1xf32>
    %cst_51 = arith.constant 9.99999996E-13 : f32
    %218 = vector.broadcast %cst_51 : f32 to vector<8x1xf32>
    %219 = arith.maximumf %217, %218 : vector<8x1xf32>
    %220 = math.rsqrt %219 : vector<8x1xf32>
    %221 = arith.mulf %209, %220 : vector<8x1xf32>
    %222 = vector.extract_strided_slice %112 {offsets = [0, 1], sizes = [8, 1], strides = [1, 1]} : vector<8x4xf32> to vector<8x1xf32>
    %223 = arith.mulf %222, %222 : vector<8x1xf32>
    %224 = vector.extract_strided_slice %112 {offsets = [0, 2], sizes = [8, 1], strides = [1, 1]} : vector<8x4xf32> to vector<8x1xf32>
    %225 = arith.mulf %224, %224 : vector<8x1xf32>
    %226 = arith.addf %223, %225 : vector<8x1xf32>
    %227 = vector.extract_strided_slice %112 {offsets = [0, 3], sizes = [8, 1], strides = [1, 1]} : vector<8x4xf32> to vector<8x1xf32>
    %228 = arith.mulf %227, %227 : vector<8x1xf32>
    %229 = arith.addf %226, %228 : vector<8x1xf32>
    %cst_52 = arith.constant 9.99999996E-13 : f32
    %230 = vector.broadcast %cst_52 : f32 to vector<8x1xf32>
    %231 = arith.maximumf %229, %230 : vector<8x1xf32>
    %232 = math.rsqrt %231 : vector<8x1xf32>
    %233 = arith.mulf %221, %232 : vector<8x1xf32>
    %234 = tpu.concatenate %127, %133, %144, %149, %184, %198, %233 in 1 : vector<8x1xf32>, vector<8x1xf32>, vector<8x1xf32>, vector<8x1xf32>, vector<8x1xf32>, vector<8x1xf32>, vector<8x1xf32> -> vector<8x7xf32>
    %235 = vector.extract_strided_slice %92 {offsets = [0, 0], sizes = [1, 7], strides = [1, 1]} : vector<2x8xf32> to vector<1x7xf32>
    %236 = vector.broadcast %235 : vector<1x7xf32> to vector<8x7xf32>
    %237 = arith.subf %234, %236 : vector<8x7xf32>
    %238 = vector.extract_strided_slice %92 {offsets = [1, 0], sizes = [1, 7], strides = [1, 1]} : vector<2x8xf32> to vector<1x7xf32>
    %239 = vector.broadcast %238 : vector<1x7xf32> to vector<8x7xf32>
    %240 = arith.mulf %237, %239 : vector<8x7xf32>
    %cst_53 = arith.constant 0.000000e+00 : f32
    %241 = vector.broadcast %cst_53 : f32 to vector<8x97xf32>
    %242 = tpu.concatenate %89, %90, %91, %240, %234, %241 in 1 : vector<8x5xf32>, vector<8x6xf32>, vector<8x6xf32>, vector<8x7xf32>, vector<8x7xf32>, vector<8x97xf32> -> vector<8x128xf32>
    %c0_54 = arith.constant 0 : index
    %c0_55 = arith.constant 0 : index
    %243 = vector.load %arg13[%c0_54, %c0_55] : memref<8x128xf32, #tpu.memory_space<vmem>>, vector<8x128xf32>
    tpu.vector_store %arg13[%c0_54, %c0_55], %242 {strides = array<i32>} : memref<8x128xf32, #tpu.memory_space<vmem>>, vector<8x128xf32>,
    return
  }
  func.func @transform_0(%arg0: i32) -> (i32, i32) {
    %c0_i32 = arith.constant 0 : i32
    %c0_i32_0 = arith.constant 0 : i32
    %c0_i32_1 = arith.constant 0 : i32
    return %c0_i32, %c0_i32_0 : i32, i32
  }
  func.func @transform_1(%arg0: i32) -> (i32, i32) {
    %c0_i32 = arith.constant 0 : i32
    %c0_i32_0 = arith.constant 0 : i32
    %c0_i32_1 = arith.constant 0 : i32
    return %c0_i32, %c0_i32_0 : i32, i32
  }
  func.func @transform_2(%arg0: i32) -> (i32, i32) {
    %c0_i32 = arith.constant 0 : i32
    %c0_i32_0 = arith.constant 0 : i32
    %c0_i32_1 = arith.constant 0 : i32
    return %c0_i32, %c0_i32_0 : i32, i32
  }
  func.func @transform_3(%arg0: i32) -> (i32, i32) {
    %c0_i32 = arith.constant 0 : i32
    %c0_i32_0 = arith.constant 0 : i32
    %c0_i32_1 = arith.constant 0 : i32
    return %c0_i32, %c0_i32_0 : i32, i32
  }
  func.func @transform_4(%arg0: i32) -> (i32, i32) {
    %c0_i32 = arith.constant 0 : i32
    %c0_i32_0 = arith.constant 0 : i32
    %c0_i32_1 = arith.constant 0 : i32
    return %c0_i32, %c0_i32_0 : i32, i32
  }
  func.func @transform_5(%arg0: i32) -> (i32, i32) {
    %c0_i32 = arith.constant 0 : i32
    %c0_i32_0 = arith.constant 0 : i32
    %c0_i32_1 = arith.constant 0 : i32
    return %c0_i32, %c0_i32_0 : i32, i32
  }
  func.func @transform_6(%arg0: i32) -> (i32, i32) {
    %c0_i32 = arith.constant 0 : i32
    %c0_i32_0 = arith.constant 0 : i32
    %c0_i32_1 = arith.constant 0 : i32
    return %c0_i32, %c0_i32_0 : i32, i32
  }
  func.func @transform_7(%arg0: i32) -> (i32, i32) {
    %c0_i32 = arith.constant 0 : i32
    %c0_i32_0 = arith.constant 0 : i32
    %c0_i32_1 = arith.constant 0 : i32
    return %c0_i32, %c0_i32_0 : i32, i32
  }
  func.func @transform_8(%arg0: i32) -> (i32, i32) {
    %c0_i32 = arith.constant 0 : i32
    %c0_i32_0 = arith.constant 0 : i32
    %c0_i32_1 = arith.constant 0 : i32
    return %c0_i32, %c0_i32_0 : i32, i32
  }
  func.func @transform_9(%arg0: i32) -> (i32, i32) {
    %c0_i32 = arith.constant 0 : i32
    %c0_i32_0 = arith.constant 0 : i32
    %c0_i32_1 = arith.constant 0 : i32
    return %c0_i32, %c0_i32_0 : i32, i32
  }
  func.func @transform_10(%arg0: i32) -> (i32, i32) {
    %c0_i32 = arith.constant 0 : i32
    %c0_i32_0 = arith.constant 0 : i32
    %c0_i32_1 = arith.constant 0 : i32
    return %c0_i32, %c0_i32_0 : i32, i32
  }
  func.func @transform_11(%arg0: i32) -> (i32, i32) {
    %c0_i32 = arith.constant 0 : i32
    %c0_i32_0 = arith.constant 0 : i32
    %c0_i32_1 = arith.constant 0 : i32
    return %c0_i32, %c0_i32_0 : i32, i32
  }
  func.func @transform_12(%arg0: i32) -> (i32, i32) {
    %c0_i32 = arith.constant 0 : i32
    %c0_i32_0 = arith.constant 0 : i32
    %c0_i32_1 = arith.constant 0 : i32
    return %c0_i32, %c0_i32_0 : i32, i32
  }
}

</mosaic_0001>

<llo_original>
// kernel: htautau_forward.1
$region0: #{htautau_forward.1}
  #allocation0 [shape = 'u32[]', space=smem, size = 0x4, offset = 0x4, fixed_abs, tag = 'smem constant byte address 0x4 - core index']
  #allocation1 [shape = 'u32[72,128]{1,0:T(1,128)}', space=vmem, size = 0x9000, scoped, tag = 'internal scratch']
  %s0 = inlined_call_operand.vmem [shape: f32[8,16], index: 0, kind: input, shape index: {}]
  %s1 = inlined_call_operand.vmem [shape: s32[8,2], index: 1, kind: input, shape index: {}]
  %s2 = inlined_call_operand.hbm [shape: f32[16,128], index: 2, kind: input, shape index: {}]
  %s3 = inlined_call_operand.hbm [shape: f32[8,128], index: 3, kind: input, shape index: {}]
  %s4 = inlined_call_operand.vmem [shape: f32[1,128], index: 4, kind: input, shape index: {}]
  %s5 = inlined_call_operand.hbm [shape: f32[128,128], index: 5, kind: input, shape index: {}]
  %s6 = inlined_call_operand.hbm [shape: f32[1,128], index: 6, kind: input, shape index: {}]
  %s7 = inlined_call_operand.hbm [shape: f32[128,128], index: 7, kind: input, shape index: {}]
  %s8 = inlined_call_operand.hbm [shape: f32[1,128], index: 8, kind: input, shape index: {}]
  %s9 = inlined_call_operand.hbm [shape: f32[128,128], index: 9, kind: input, shape index: {}]
  %s10 = inlined_call_operand.hbm [shape: f32[1,128], index: 10, kind: input, shape index: {}]
  %s11 = inlined_call_operand.vmem [shape: f32[2,8], index: 11, kind: input, shape index: {}]
  %s12 = inlined_call_operand.vmem [shape: f32[8,128], index: 12, kind: output, shape index: {}]
  %s13 = sld [smem:[#allocation0]]
  $region90: #{htautau_forward.1} parent=0
    _
  %s15 = ssub.s32 1, %s13
  %s16 = scalar_select 0, %s15, %s13
  $region1: #{htautau_forward.1} parent=0
    #allocation2 [shape = 'u8[8192]{0}', space=vmem, size = 0x2000, scoped, tag = 'input window, operand 2, single buffered']
    #allocation3 [shape = 's32[1]{0}', space=sflag, size = 0x4, scoped, tag = 'scoped memory for htautau_forward.1']
    #allocation4 [shape = 'u8[4096]{0}', space=vmem, size = 0x1000, scoped, tag = 'input window, operand 3, single buffered']
    #allocation5 [shape = 's32[1]{0}', space=sflag, size = 0x4, scoped, tag = 'scoped memory for htautau_forward.1']
    #allocation6 [shape = 'u8[65536]{0}', space=vmem, size = 0x10000, scoped, tag = 'input window, operand 5, single buffered']
    #allocation7 [shape = 'u8[512]{0}', space=vmem, size = 0x400, scoped, tag = 'input window, operand 6, single buffered']
    #allocation8 [shape = 's32[1]{0}', space=sflag, size = 0x4, scoped, tag = 'scoped memory for htautau_forward.1']
    #allocation9 [shape = 'u8[65536]{0}', space=vmem, size = 0x10000, scoped, tag = 'input window, operand 7, single buffered']
    #allocation10 [shape = 'u8[512]{0}', space=vmem, size = 0x400, scoped, tag = 'input window, operand 8, single buffered']
    #allocation11 [shape = 's32[1]{0}', space=sflag, size = 0x4, scoped, tag = 'scoped memory for htautau_forward.1']
    #allocation12 [shape = 'u8[65536]{0}', space=vmem, size = 0x10000, scoped, tag = 'input window, operand 9, single buffered']
    #allocation13 [shape = 'u8[512]{0}', space=vmem, size = 0x400, scoped, tag = 'input window, operand 10, single buffered']
    #allocation14 [shape = 's32[1]{0}', space=sflag, size = 0x4, scoped, tag = 'scoped memory for htautau_forward.1']
    %17 = vsyncpa [#allocation3], 0
    %18 = vsyncpa [#allocation5], 0
    %19 = vsyncpa [#allocation8], 0
    %20 = vsyncpa [#allocation11], 0
    %21 = vsyncpa [#allocation14], 0
    // Predicated region
    $region2: #{htautau_forward.1} parent=1 // pred_check
      _
    $region3: #{htautau_forward.1} parent=1 // pred_check_branch
      %23 = sbr.rel (0) target = $region5
    $region4: #{htautau_forward.1} parent=1 // pred_region
      _
    $region5: #{htautau_forward.1} parent=1 // pred_fallthru
      _
    // Predicated region
    $region6: #{htautau_forward.1} parent=1 // pred_check
      _
    $region7: #{htautau_forward.1} parent=1 // pred_check_branch
      %25 = sbr.rel (0) target = $region9
    $region8: #{htautau_forward.1} parent=1 // pred_region
      _
    $region9: #{htautau_forward.1} parent=1 // pred_fallthru
      _
    // Predicated region
    $region10: #{htautau_forward.1} parent=1 // pred_check
      _
    $region11: #{htautau_forward.1} parent=1 // pred_check_branch
      %27 = sbr.rel (0) target = $region13
    $region12: #{htautau_forward.1} parent=1 // pred_region
      %29 = vsyncadd [#allocation3], 0
      %s30 = sshll.u32 %s2, 4
      %s31 = int_to_ptr.hbm [resolvable:$true] %s30
      %s32 = sshll.u32 [#allocation2], 4
      %s33 = int_to_ptr.vmem [resolvable:$true] %s32
      %38 = dma.hbm_to_vmem [thread:$0]  %s31, 256, %s33, [#allocation3], 128, 128, 8
    $region13: #{htautau_forward.1} parent=1 // pred_fallthru
      _
    // Predicated region
    $region14: #{htautau_forward.1} parent=1 // pred_check
      _
    $region15: #{htautau_forward.1} parent=1 // pred_check_branch
      %40 = sbr.rel (0) target = $region17
    $region16: #{htautau_forward.1} parent=1 // pred_region
      %42 = vsyncadd [#allocation5], 0
      %s44 = sshll.u32 %s3, 4
      %s45 = int_to_ptr.hbm [resolvable:$true] %s44
      %s46 = sshll.u32 [#allocation4], 4
      %s47 = int_to_ptr.vmem [resolvable:$true] %s46
      %49 = dma.hbm_to_vmem [thread:$0]  %s45, 128, %s47, [#allocation5]
    $region17: #{htautau_forward.1} parent=1 // pred_fallthru
      _
    // Predicated region
    $region18: #{htautau_forward.1} parent=1 // pred_check
      _
    $region19: #{htautau_forward.1} parent=1 // pred_check_branch
      %51 = sbr.rel (0) target = $region21
    $region20: #{htautau_forward.1} parent=1 // pred_region
      _
    $region21: #{htautau_forward.1} parent=1 // pred_fallthru
      _
    // Predicated region
    $region22: #{htautau_forward.1} parent=1 // pred_check
      _
    $region23: #{htautau_forward.1} parent=1 // pred_check_branch
      %53 = sbr.rel (0) target = $region25
    $region24: #{htautau_forward.1} parent=1 // pred_region
      %55 = vsyncadd [#allocation5], 0
      %s56 = sshll.u32 %s5, 4
      %s57 = int_to_ptr.hbm [resolvable:$true] %s56
      %s58 = sshll.u32 [#allocation6], 4
      %s59 = int_to_ptr.vmem [resolvable:$true] %s58
      %64 = dma.hbm_to_vmem [thread:$0]  %s57, 2048, %s59, [#allocation5], 128, 128, 8
    $region25: #{htautau_forward.1} parent=1 // pred_fallthru
      _
    // Predicated region
    $region26: #{htautau_forward.1} parent=1 // pred_check
      _
    $region27: #{htautau_forward.1} parent=1 // pred_check_branch
      %66 = sbr.rel (0) target = $region29
    $region28: #{htautau_forward.1} parent=1 // pred_region
      %68 = vsyncadd [#allocation8], 0
      %s70 = sshll.u32 %s6, 4
      %s71 = int_to_ptr.hbm [resolvable:$true] %s70
      %s72 = sshll.u32 [#allocation7], 4
      %s73 = int_to_ptr.vmem [resolvable:$true] %s72
      %75 = dma.hbm_to_vmem [thread:$0]  %s71, 16, %s73, [#allocation8]
    $region29: #{htautau_forward.1} parent=1 // pred_fallthru
      _
    // Predicated region
    $region30: #{htautau_forward.1} parent=1 // pred_check
      _
    $region31: #{htautau_forward.1} parent=1 // pred_check_branch
      %77 = sbr.rel (0) target = $region33
    $region32: #{htautau_forward.1} parent=1 // pred_region
      %79 = vsyncadd [#allocation8], 0
      %s80 = sshll.u32 %s7, 4
      %s81 = int_to_ptr.hbm [resolvable:$true] %s80
      %s82 = sshll.u32 [#allocation9], 4
      %s83 = int_to_ptr.vmem [resolvable:$true] %s82
      %88 = dma.hbm_to_vmem [thread:$0]  %s81, 2048, %s83, [#allocation8], 128, 128, 8
    $region33: #{htautau_forward.1} parent=1 // pred_fallthru
      _
    // Predicated region
    $region34: #{htautau_forward.1} parent=1 // pred_check
      _
    $region35: #{htautau_forward.1} parent=1 // pred_check_branch
      %90 = sbr.rel (0) target = $region37
    $region36: #{htautau_forward.1} parent=1 // pred_region
      %92 = vsyncadd [#allocation11], 0
      %s94 = sshll.u32 %s8, 4
      %s95 = int_to_ptr.hbm [resolvable:$true] %s94
      %s96 = sshll.u32 [#allocation10], 4
      %s97 = int_to_ptr.vmem [resolvable:$true] %s96
      %99 = dma.hbm_to_vmem [thread:$0]  %s95, 16, %s97, [#allocation11]
    $region37: #{htautau_forward.1} parent=1 // pred_fallthru
      _
    // Predicated region
    $region38: #{htautau_forward.1} parent=1 // pred_check
      _
    $region39: #{htautau_forward.1} parent=1 // pred_check_branch
      %101 = sbr.rel (0) target = $region41
    $region40: #{htautau_forward.1} parent=1 // pred_region
      %103 = vsyncadd [#allocation11], 0
      %s104 = sshll.u32 %s9, 4
      %s105 = int_to_ptr.hbm [resolvable:$true] %s104
      %s106 = sshll.u32 [#allocation12], 4
      %s107 = int_to_ptr.vmem [resolvable:$true] %s106
      %112 = dma.hbm_to_vmem [thread:$0]  %s105, 2048, %s107, [#allocation11], 128, 128, 8
    $region41: #{htautau_forward.1} parent=1 // pred_fallthru
      _
    // Predicated region
    $region42: #{htautau_forward.1} parent=1 // pred_check
      _
    $region43: #{htautau_forward.1} parent=1 // pred_check_branch
      %114 = sbr.rel (0) target = $region45
    $region44: #{htautau_forward.1} parent=1 // pred_region
      %116 = vsyncadd [#allocation14], 0
      %s118 = sshll.u32 %s10, 4
      %s119 = int_to_ptr.hbm [resolvable:$true] %s118
      %s120 = sshll.u32 [#allocation13], 4
      %s121 = int_to_ptr.vmem [resolvable:$true] %s120
      %123 = dma.hbm_to_vmem [thread:$0]  %s119, 16, %s121, [#allocation14]
    $region45: #{htautau_forward.1} parent=1 // pred_fallthru
      _
    // Predicated region
    $region46: #{htautau_forward.1} parent=1 // pred_check
      _
    $region47: #{htautau_forward.1} parent=1 // pred_check_branch
      %125 = sbr.rel (0) target = $region49
    $region48: #{htautau_forward.1} parent=1 // pred_region
      _
    $region49: #{htautau_forward.1} parent=1 // pred_fallthru
      _
    // Predicated region
    $region50: #{htautau_forward.1} parent=1 // pred_check
      _
    $region51: #{htautau_forward.1} parent=1 // pred_check_branch
      %127 = sbr.rel (0) target = $region53
    $region52: #{htautau_forward.1} parent=1 // pred_region
      %129 = dma.done [#allocation3], 256
    $region53: #{htautau_forward.1} parent=1 // pred_fallthru
      _
    // Predicated region
    $region54: #{htautau_forward.1} parent=1 // pred_check
      _
    $region55: #{htautau_forward.1} parent=1 // pred_check_branch
      %131 = sbr.rel (0) target = $region57
    $region56: #{htautau_forward.1} parent=1 // pred_region
      %133 = dma.done [#allocation5], 128
    $region57: #{htautau_forward.1} parent=1 // pred_fallthru
      _
    // Predicated region
    $region58: #{htautau_forward.1} parent=1 // pred_check
      _
    $region59: #{htautau_forward.1} parent=1 // pred_check_branch
      %135 = sbr.rel (0) target = $region61
    $region60: #{htautau_forward.1} parent=1 // pred_region
      %137 = dma.done [#allocation5], 2048
    $region61: #{htautau_forward.1} parent=1 // pred_fallthru
      _
    // Predicated region
    $region62: #{htautau_forward.1} parent=1 // pred_check
      _
    $region63: #{htautau_forward.1} parent=1 // pred_check_branch
      %139 = sbr.rel (0) target = $region65
    $region64: #{htautau_forward.1} parent=1 // pred_region
      %141 = dma.done [#allocation8], 16
    $region65: #{htautau_forward.1} parent=1 // pred_fallthru
      _
    // Predicated region
    $region66: #{htautau_forward.1} parent=1 // pred_check
      _
    $region67: #{htautau_forward.1} parent=1 // pred_check_branch
      %143 = sbr.rel (0) target = $region69
    $region68: #{htautau_forward.1} parent=1 // pred_region
      %145 = dma.done [#allocation8], 2048
    $region69: #{htautau_forward.1} parent=1 // pred_fallthru
      _
    // Predicated region
    $region70: #{htautau_forward.1} parent=1 // pred_check
      _
    $region71: #{htautau_forward.1} parent=1 // pred_check_branch
      %147 = sbr.rel (0) target = $region73
    $region72: #{htautau_forward.1} parent=1 // pred_region
      %149 = dma.done [#allocation11], 16
    $region73: #{htautau_forward.1} parent=1 // pred_fallthru
      _
    // Predicated region
    $region74: #{htautau_forward.1} parent=1 // pred_check
      _
    $region75: #{htautau_forward.1} parent=1 // pred_check_branch
      %151 = sbr.rel (0) target = $region77
    $region76: #{htautau_forward.1} parent=1 // pred_region
      %153 = dma.done [#allocation11], 2048
    $region77: #{htautau_forward.1} parent=1 // pred_fallthru
      _
    // Predicated region
    $region78: #{htautau_forward.1} parent=1 // pred_check
      _
    $region79: #{htautau_forward.1} parent=1 // pred_check_branch
      %155 = sbr.rel (0) target = $region81
    $region80: #{htautau_forward.1} parent=1 // pred_region
      %157 = dma.done [#allocation14], 16
    $region81: #{htautau_forward.1} parent=1 // pred_fallthru
      _
    %v158 = vld [vmem:[%s0] sm:$0xff]
    %v159 = vld [vmem:[%s1] sm:$0xff]
    %v160 = vlaneseq
    %v161 = vand.u32 %v160, 127
    %vm162 = vcmp.lt.s32.totalorder %v161, 3
    %v163 = vsel %vm162, %v161, 4294967295
    %vm164 = vcmp.eq.s32.totalorder %v161, 3
    %vm165 = vcmp.eq.s32.totalorder %v161, 4
    %v166 = vsel %vm165, 7, 4294967295
    %v167 = vsel %vm164, 5, %v166
    %168 = vset.pattern.permute.xlu0 0
    %169 = vperm.xlu0 %168, %v159
    %v170 = vpop.permute.xlu0 %169
    %vm171 = vcmp.eq.s32.totalorder %v170, %v163
    %172 = vset.pattern.permute.xlu0 1
    %173 = vperm.xlu0 %172, %v159
    %v174 = vpop.permute.xlu0 %173
    %vm175 = vcmp.eq.s32.totalorder %v174, %v167
    %vm176 = vmor %vm171, %vm175
    %v177 = vsel %vm176, 1, 0
    %v178 = vcvt.s32.f32 %v177
    %v179 = vld [vmem:[#allocation2] sm:$0xff]
    %v180 = vld [vmem:[#allocation2 + $0x8] sm:$0xff]
    %v181 = vld [vmem:[#allocation4] sm:$0xff]
    %vm182 = vcmask 64512
    %v184 = vsel %vm182, %v178, 0
    %186 = vmatpush.msra.mxu0 0.0
    %187 = vmatpush.msra.mxu0 0.0
    %188 = vmatpush.msra.mxu0 0.0
    %189 = vmatpush.msra.mxu0 0.0
    %190 = vmatpush.msra.mxu0 0.0
    %191 = vmatpush.msra.mxu0 0.0
    %192 = vmatpush.msra.mxu0 0.0
    %193 = vmatpush.msra.mxu0 0.0
    %194 = vmatpush.msra.mxu0 0.0
    %195 = vmatpush.msra.mxu0 0.0
    %196 = vmatpush.msra.mxu0 0.0
    %197 = vmatpush.msra.mxu0 0.0
    %198 = vmatpush.msra.mxu0 0.0
    %199 = vmatpush.msra.mxu0 0.0
    %200 = vmatpush.msra.mxu0 0.0
    %201 = vmatpush.msra.mxu0 %v181
    %202 = vmatmul.f32.gmra.mxu0 %v184
    %v203 = vpop.f32.mrf.mxu0
    %v204 = vadd.f32 0.0, %v203
    %205 = vdwg.mxu0
    %vm206 = vcmask 130048
    %v208 = vsel %vm206, %v158, 0
    %210 = vmatpush.msra.mxu0 0.0
    %211 = vmatpush.msra.mxu0 0.0
    %212 = vmatpush.msra.mxu0 0.0
    %213 = vmatpush.msra.mxu0 0.0
    %214 = vmatpush.msra.mxu0 0.0
    %215 = vmatpush.msra.mxu0 0.0
    %216 = vmatpush.msra.mxu0 0.0
    %217 = vmatpush.msra.mxu0 0.0
    %218 = vmatpush.msra.mxu0 0.0
    %219 = vmatpush.msra.mxu0 0.0
    %220 = vmatpush.msra.mxu0 0.0
    %221 = vmatpush.msra.mxu0 0.0
    %222 = vmatpush.msra.mxu0 0.0
    %223 = vmatpush.msra.mxu0 0.0
    %224 = vmatpush.msra.mxu0 %v180
    %225 = vmatpush.msra.mxu0 %v179
    %226 = vmatmul.f32.gmra.mxu0 %v208
    %v227 = vpop.f32.mrf.mxu0
    %v228 = vadd.f32 %v204, %v227
    %229 = vdwg.mxu0
    %v230 = vld [vmem:[%s4] sm:$0x1]
    %v232 = vperm.slane %v230, 0
    %v234 = vadd.f32 %v228, %v232
    %vm235 = vcmp.gt.f32.partialorder %v234, 0.0
    %v236 = vmin.f32 %v234, 0.0
    %v237 = vmul.f32 %v236, 1.442695
    %v238 = vpow.pop %v237
    %v239 = vsub.f32 %v238, 1.0
    %v240 = vsel %vm235, %v234, %v239
    %v241 = vld [vmem:[#allocation6] sm:$0xff]
    %v242 = vld [vmem:[#allocation6 + $0x8] sm:$0xff]
    %v243 = vld [vmem:[#allocation6 + $0x10] sm:$0xff]
    %v244 = vld [vmem:[#allocation6 + $0x18] sm:$0xff]
    %v245 = vld [vmem:[#allocation6 + $0x20] sm:$0xff]
    %v246 = vld [vmem:[#allocation6 + $0x28] sm:$0xff]
    %v247 = vld [vmem:[#allocation6 + $0x30] sm:$0xff]
    %v248 = vld [vmem:[#allocation6 + $0x38] sm:$0xff]
    %v249 = vld [vmem:[#allocation6 + $0x40] sm:$0xff]
    %v250 = vld [vmem:[#allocation6 + $0x48] sm:$0xff]
    %v251 = vld [vmem:[#allocation6 + $0x50] sm:$0xff]
    %v252 = vld [vmem:[#allocation6 + $0x58] sm:$0xff]
    %v253 = vld [vmem:[#allocation6 + $0x60] sm:$0xff]
    %v254 = vld [vmem:[#allocation6 + $0x68] sm:$0xff]
    %v255 = vld [vmem:[#allocation6 + $0x70] sm:$0xff]
    %v256 = vld [vmem:[#allocation6 + $0x78] sm:$0xff]
    %v257 = vld [vmem:[#allocation7] sm:$0x1]
    %v259 = vperm.slane %v257, 0
    %261 = vmatpush.msra.mxu0 %v256
    %262 = vmatpush.msra.mxu0 %v255
    %263 = vmatpush.msra.mxu0 %v254
    %264 = vmatpush.msra.mxu0 %v253
    %265 = vmatpush.msra.mxu0 %v252
    %266 = vmatpush.msra.mxu0 %v251
    %267 = vmatpush.msra.mxu0 %v250
    %268 = vmatpush.msra.mxu0 %v249
    %269 = vmatpush.msra.mxu0 %v248
    %270 = vmatpush.msra.mxu0 %v247
    %271 = vmatpush.msra.mxu0 %v246
    %272 = vmatpush.msra.mxu0 %v245
    %273 = vmatpush.msra.mxu0 %v244
    %274 = vmatpush.msra.mxu0 %v243
    %275 = vmatpush.msra.mxu0 %v242
    %276 = vmatpush.msra.mxu0 %v241
    %277 = vmatmul.f32.gmra.mxu0 %v240
    %v278 = vpop.f32.mrf.mxu0
    %v279 = vadd.f32 %v259, %v278
    %280 = vdwg.mxu0
    %vm281 = vcmp.gt.f32.partialorder %v279, 0.0
    %v282 = vmin.f32 %v279, 0.0
    %v283 = vmul.f32 %v282, 1.442695
    %v284 = vpow.pop %v283
    %v285 = vsub.f32 %v284, 1.0
    %v286 = vsel %vm281, %v279, %v285
    %v287 = vld [vmem:[#allocation9] sm:$0xff]
    %v288 = vld [vmem:[#allocation9 + $0x8] sm:$0xff]
    %v289 = vld [vmem:[#allocation9 + $0x10] sm:$0xff]
    %v290 = vld [vmem:[#allocation9 + $0x18] sm:$0xff]
    %v291 = vld [vmem:[#allocation9 + $0x20] sm:$0xff]
    %v292 = vld [vmem:[#allocation9 + $0x28] sm:$0xff]
    %v293 = vld [vmem:[#allocation9 + $0x30] sm:$0xff]
    %v294 = vld [vmem:[#allocation9 + $0x38] sm:$0xff]
    %v295 = vld [vmem:[#allocation9 + $0x40] sm:$0xff]
    %v296 = vld [vmem:[#allocation9 + $0x48] sm:$0xff]
    %v297 = vld [vmem:[#allocation9 + $0x50] sm:$0xff]
    %v298 = vld [vmem:[#allocation9 + $0x58] sm:$0xff]
    %v299 = vld [vmem:[#allocation9 + $0x60] sm:$0xff]
    %v300 = vld [vmem:[#allocation9 + $0x68] sm:$0xff]
    %v301 = vld [vmem:[#allocation9 + $0x70] sm:$0xff]
    %v302 = vld [vmem:[#allocation9 + $0x78] sm:$0xff]
    %v303 = vld [vmem:[#allocation10] sm:$0x1]
    %v305 = vperm.slane %v303, 0
    %307 = vmatpush.msra.mxu0 %v302
    %308 = vmatpush.msra.mxu0 %v301
    %309 = vmatpush.msra.mxu0 %v300
    %310 = vmatpush.msra.mxu0 %v299
    %311 = vmatpush.msra.mxu0 %v298
    %312 = vmatpush.msra.mxu0 %v297
    %313 = vmatpush.msra.mxu0 %v296
    %314 = vmatpush.msra.mxu0 %v295
    %315 = vmatpush.msra.mxu0 %v294
    %316 = vmatpush.msra.mxu0 %v293
    %317 = vmatpush.msra.mxu0 %v292
    %318 = vmatpush.msra.mxu0 %v291
    %319 = vmatpush.msra.mxu0 %v290
    %320 = vmatpush.msra.mxu0 %v289
    %321 = vmatpush.msra.mxu0 %v288
    %322 = vmatpush.msra.mxu0 %v287
    %323 = vmatmul.f32.gmra.mxu0 %v286
    %v324 = vpop.f32.mrf.mxu0
    %v325 = vadd.f32 %v305, %v324
    %326 = vdwg.mxu0
    %vm327 = vcmp.gt.f32.partialorder %v325, 0.0
    %v328 = vmin.f32 %v325, 0.0
    %v329 = vmul.f32 %v328, 1.442695
    %v330 = vpow.pop %v329
    %v331 = vsub.f32 %v330, 1.0
    %v332 = vsel %vm327, %v325, %v331
    %v333 = vld [vmem:[#allocation12] sm:$0xff]
    %v334 = vld [vmem:[#allocation12 + $0x8] sm:$0xff]
    %v335 = vld [vmem:[#allocation12 + $0x10] sm:$0xff]
    %v336 = vld [vmem:[#allocation12 + $0x18] sm:$0xff]
    %v337 = vld [vmem:[#allocation12 + $0x20] sm:$0xff]
    %v338 = vld [vmem:[#allocation12 + $0x28] sm:$0xff]
    %v339 = vld [vmem:[#allocation12 + $0x30] sm:$0xff]
    %v340 = vld [vmem:[#allocation12 + $0x38] sm:$0xff]
    %v341 = vld [vmem:[#allocation12 + $0x40] sm:$0xff]
    %v342 = vld [vmem:[#allocation12 + $0x48] sm:$0xff]
    %v343 = vld [vmem:[#allocation12 + $0x50] sm:$0xff]
    %v344 = vld [vmem:[#allocation12 + $0x58] sm:$0xff]
    %v345 = vld [vmem:[#allocation12 + $0x60] sm:$0xff]
    %v346 = vld [vmem:[#allocation12 + $0x68] sm:$0xff]
    %v347 = vld [vmem:[#allocation12 + $0x70] sm:$0xff]
    %v348 = vld [vmem:[#allocation12 + $0x78] sm:$0xff]
    %v349 = vld [vmem:[#allocation13] sm:$0x1]
    %v351 = vperm.slane %v349, 0
    %353 = vmatpush.msra.mxu0 %v348
    %354 = vmatpush.msra.mxu0 %v347
    %355 = vmatpush.msra.mxu0 %v346
    %356 = vmatpush.msra.mxu0 %v345
    %357 = vmatpush.msra.mxu0 %v344
    %358 = vmatpush.msra.mxu0 %v343
    %359 = vmatpush.msra.mxu0 %v342
    %360 = vmatpush.msra.mxu0 %v341
    %361 = vmatpush.msra.mxu0 %v340
    %362 = vmatpush.msra.mxu0 %v339
    %363 = vmatpush.msra.mxu0 %v338
    %364 = vmatpush.msra.mxu0 %v337
    %365 = vmatpush.msra.mxu0 %v336
    %366 = vmatpush.msra.mxu0 %v335
    %367 = vmatpush.msra.mxu0 %v334
    %368 = vmatpush.msra.mxu0 %v333
    %369 = vmatmul.f32.gmra.mxu0 %v332
    %v370 = vpop.f32.mrf.mxu0
    %v371 = vadd.f32 %v351, %v370
    %372 = vdwg.mxu0
    %vm373 = vcmp.lt.s32.totalorder %v161, 5
    %v374 = vsel %vm373, %v371, -1e+30
    %375 = vmax.xlane.f32.xlu0 %v374
    %v376 = vpop.xlane.xlu0 %375
    %v377 = vsub.f32 %v374, %v376
    %v378 = vmul.f32 %v377, 1.442695
    %v379 = vpow.pop %v378
    %380 = vadd.xlane.f32.xlu0 %v379
    %v381 = vpop.xlane.xlu0 %380
    %v382 = vrcp.pop %v381
    %v383 = vmul.f32 %v379, %v382
    %v384 = vld [vmem:[%s11] sm:$0x3]
    %v385 = vmul.f32 %v371, %v371
    %387 = vrot.lane.b32.xlu0 %v385, 56
    %v388 = vpop.permute.xlu0 %387
    %vm390 = vcmask 23552
    %v391 = vsel %vm390, %v388, 0.0
    %392 = vadd.xlane.f32.xlu0 %v391
    %v393 = vpop.xlane.xlu0 %392
    %v394 = vrsqrt.pop %v393
    %v395 = vmul.f32 %v394, %v393
    %v396 = vmul.f32 %v395, %v394
    %v397 = vmul.f32 0.5, %v396
    %v398 = vsub.f32 1.5, %v397
    %v399 = vmul.f32 %v394, %v398
    %v400 = vmul.f32 %v393, %v399
    %vm401 = vcmp.eq.f32.partialorder %v393, inf
    %v402 = vsel %vm401, %v393, %v400
    %vm403 = vcmp.eq.f32.partialorder %v393, 0.0
    %v404 = vand.u32 %v393, 2147483648
    %v405 = vsel %vm403, %v404, %v402
    %407 = vrot.lane.b32.xlu0 %v371, 57
    %v408 = vpop.permute.xlu0 %407
    %vm410 = vcmask 7168
    %v411 = vsel %vm410, %v405, %v408
    %412 = vrot.lane.b32.xlu0 %v385, 53
    %v413 = vpop.permute.xlu0 %412
    %v415 = vsel %vm390, %v413, 0.0
    %416 = vadd.xlane.f32.xlu0 %v415
    %v417 = vpop.xlane.xlu0 %416
    %v418 = vrsqrt.pop %v417
    %v419 = vmul.f32 %v418, %v417
    %v420 = vmul.f32 %v419, %v418
    %v421 = vmul.f32 0.5, %v420
    %v422 = vsub.f32 1.5, %v421
    %v423 = vmul.f32 %v418, %v422
    %v424 = vmul.f32 %v417, %v423
    %vm425 = vcmp.eq.f32.partialorder %v417, inf
    %v426 = vsel %vm425, %v417, %v424
    %vm427 = vcmp.eq.f32.partialorder %v417, 0.0
    %v428 = vand.u32 %v417, 2147483648
    %v429 = vsel %vm427, %v428, %v426
    %430 = vrot.lane.b32.xlu0 %v371, 54
    %v431 = vpop.permute.xlu0 %430
    %v433 = vsel %vm410, %v429, %v431
    %v434 = vadd.f32 %v158, %v411
    %436 = vrot.lane.b32.xlu0 %v433, 4
    %v437 = vpop.permute.xlu0 %436
    %v439 = vadd.f32 %v158, %v437
    %441 = vrot.lane.b32.xlu0 %v439, 124
    %v442 = vpop.permute.xlu0 %441
    %v444 = vadd.f32 %v434, %v442
    %445 = vrot.lane.b32.xlu0 %v158, 124
    %v446 = vpop.permute.xlu0 %445
    %v448 = vadd.f32 %v158, %v446
    %450 = vrot.lane.b32.xlu0 %v448, 120
    %v451 = vpop.permute.xlu0 %450
    %v453 = vadd.f32 %v444, %v451
    %v454 = vmul.f32 %v444, %v444
    %456 = vrot.lane.b32.xlu0 %v454, 127
    %v457 = vpop.permute.xlu0 %456
    %v459 = vsub.f32 %v454, %v457
    %460 = vrot.lane.b32.xlu0 %v454, 126
    %v461 = vpop.permute.xlu0 %460
    %v463 = vsub.f32 %v459, %v461
    %464 = vrot.lane.b32.xlu0 %v454, 125
    %v465 = vpop.permute.xlu0 %464
    %v467 = vsub.f32 %v463, %v465
    %v468 = vmax.f32 %v467, 0.0
    %v469 = vrsqrt.pop %v468
    %v470 = vmul.f32 %v469, %v468
    %v471 = vmul.f32 %v470, %v469
    %v472 = vmul.f32 0.5, %v471
    %v473 = vsub.f32 1.5, %v472
    %v474 = vmul.f32 %v469, %v473
    %v475 = vmul.f32 %v468, %v474
    %vm476 = vcmp.eq.f32.partialorder %v468, inf
    %v477 = vsel %vm476, %v468, %v475
    %vm478 = vcmp.eq.f32.partialorder %v468, 0.0
    %v479 = vand.u32 %v468, 2147483648
    %v480 = vsel %vm478, %v479, %v477
    %v481 = vadd.f32 %v454, %v457
    %v482 = vrsqrt.pop %v481
    %v483 = vmul.f32 %v482, %v481
    %v484 = vmul.f32 %v483, %v482
    %v485 = vmul.f32 0.5, %v484
    %v486 = vsub.f32 1.5, %v485
    %v487 = vmul.f32 %v482, %v486
    %v488 = vmul.f32 %v481, %v487
    %vm489 = vcmp.eq.f32.partialorder %v481, inf
    %v490 = vsel %vm489, %v481, %v488
    %vm491 = vcmp.eq.f32.partialorder %v481, 0.0
    %v492 = vand.u32 %v481, 2147483648
    %v493 = vsel %vm491, %v492, %v490
    %v494 = vmax.f32 %v493, 1e-12
    %v495 = vrcp.pop %v494
    %497 = vrot.lane.b32.xlu0 %v495, 2
    %v498 = vpop.permute.xlu0 %497
    %v500 = vmul.f32 %v444, %v498
    %v501 = vmul.f32 %v500, %v500
    %v502 = vadd.f32 %v501, 1.0
    %v503 = vrsqrt.pop %v502
    %v504 = vmul.f32 %v503, %v502
    %v505 = vmul.f32 %v504, %v503
    %v506 = vmul.f32 0.5, %v505
    %v507 = vsub.f32 1.5, %v506
    %v508 = vmul.f32 %v503, %v507
    %v509 = vmul.f32 %v502, %v508
    %vm510 = vcmp.eq.f32.partialorder %v502, inf
    %v511 = vsel %vm510, %v502, %v509
    %vm512 = vcmp.eq.f32.partialorder %v502, 0.0
    %v513 = vand.u32 %v502, 2147483648
    %v514 = vsel %vm512, %v513, %v511
    %v515 = vadd.f32 %v500, %v514
    %v516 = vlog2.pop %v515
    %v517 = vmul.f32 %v516, 0.6931472
    %v518 = vmax.f32 %v480, 1e-12
    %v519 = vrcp.pop %v518
    %v520 = vmul.f32 %v444, %v519
    %v521 = vmul.f32 %v434, %v442
    %523 = vrot.lane.b32.xlu0 %v521, 127
    %v524 = vpop.permute.xlu0 %523
    %v526 = vadd.f32 %v521, %v524
    %527 = vrot.lane.b32.xlu0 %v521, 126
    %v528 = vpop.permute.xlu0 %527
    %v530 = vadd.f32 %v526, %v528
    %v531 = vmul.f32 %v434, %v434
    %533 = vrot.lane.b32.xlu0 %v531, 127
    %v534 = vpop.permute.xlu0 %533
    %v536 = vadd.f32 %v531, %v534
    %537 = vrot.lane.b32.xlu0 %v531, 126
    %v538 = vpop.permute.xlu0 %537
    %v540 = vadd.f32 %v536, %v538
    %v541 = vmax.f32 %v540, 1e-12
    %v542 = vrsqrt.pop %v541
    %v543 = vmul.f32 %v542, %v541
    %v544 = vmul.f32 %v543, %v542
    %v545 = vmul.f32 0.5, %v544
    %v546 = vsub.f32 1.5, %v545
    %v547 = vmul.f32 %v542, %v546
    %vm548 = vweird.f32 %v541
    %vm549 = vweird.f32 %v542
    %vm550 = vmor %vm548, %vm549
    %v551 = vsel %vm550, %v542, %v547
    %v552 = vmul.f32 %v530, %v551
    %v553 = vmul.f32 %v439, %v439
    %555 = vrot.lane.b32.xlu0 %v553, 127
    %v556 = vpop.permute.xlu0 %555
    %v558 = vadd.f32 %v553, %v556
    %559 = vrot.lane.b32.xlu0 %v553, 126
    %v560 = vpop.permute.xlu0 %559
    %v562 = vadd.f32 %v558, %v560
    %v563 = vmax.f32 %v562, 1e-12
    %v564 = vrsqrt.pop %v563
    %v565 = vmul.f32 %v564, %v563
    %v566 = vmul.f32 %v565, %v564
    %v567 = vmul.f32 0.5, %v566
    %v568 = vsub.f32 1.5, %v567
    %v569 = vmul.f32 %v564, %v568
    %vm570 = vweird.f32 %v563
    %vm571 = vweird.f32 %v564
    %vm572 = vmor %vm570, %vm571
    %v573 = vsel %vm572, %v564, %v569
    %575 = vrot.lane.b32.xlu0 %v573, 124
    %v576 = vpop.permute.xlu0 %575
    %v578 = vmul.f32 %v552, %v576
    %v579 = vmul.f32 %v453, %v453
    %581 = vrot.lane.b32.xlu0 %v579, 127
    %v582 = vpop.permute.xlu0 %581
    %v584 = vsub.f32 %v579, %v582
    %585 = vrot.lane.b32.xlu0 %v579, 126
    %v586 = vpop.permute.xlu0 %585
    %v588 = vsub.f32 %v584, %v586
    %589 = vrot.lane.b32.xlu0 %v579, 125
    %v590 = vpop.permute.xlu0 %589
    %v592 = vsub.f32 %v588, %v590
    %v593 = vmax.f32 %v592, 0.0
    %v594 = vrsqrt.pop %v593
    %v595 = vmul.f32 %v594, %v593
    %v596 = vmul.f32 %v595, %v594
    %v597 = vmul.f32 0.5, %v596
    %v598 = vsub.f32 1.5, %v597
    %v599 = vmul.f32 %v594, %v598
    %v600 = vmul.f32 %v593, %v599
    %vm601 = vcmp.eq.f32.partialorder %v593, inf
    %v602 = vsel %vm601, %v593, %v600
    %vm603 = vcmp.eq.f32.partialorder %v593, 0.0
    %v604 = vand.u32 %v593, 2147483648
    %v605 = vsel %vm603, %v604, %v602
    %v606 = vmul.f32 %v444, %v451
    %608 = vrot.lane.b32.xlu0 %v606, 127
    %v609 = vpop.permute.xlu0 %608
    %v611 = vadd.f32 %v606, %v609
    %612 = vrot.lane.b32.xlu0 %v606, 126
    %v613 = vpop.permute.xlu0 %612
    %v615 = vadd.f32 %v611, %v613
    %v616 = vadd.f32 %v481, %v461
    %v617 = vmax.f32 %v616, 1e-12
    %v618 = vrsqrt.pop %v617
    %v619 = vmul.f32 %v618, %v617
    %v620 = vmul.f32 %v619, %v618
    %v621 = vmul.f32 0.5, %v620
    %v622 = vsub.f32 1.5, %v621
    %v623 = vmul.f32 %v618, %v622
    %vm624 = vweird.f32 %v617
    %vm625 = vweird.f32 %v618
    %vm626 = vmor %vm624, %vm625
    %v627 = vsel %vm626, %v618, %v623
    %v628 = vmul.f32 %v615, %v627
    %v629 = vmul.f32 %v448, %v448
    %631 = vrot.lane.b32.xlu0 %v629, 127
    %v632 = vpop.permute.xlu0 %631
    %v634 = vadd.f32 %v629, %v632
    %635 = vrot.lane.b32.xlu0 %v629, 126
    %v636 = vpop.permute.xlu0 %635
    %v638 = vadd.f32 %v634, %v636
    %v639 = vmax.f32 %v638, 1e-12
    %v640 = vrsqrt.pop %v639
    %v641 = vmul.f32 %v640, %v639
    %v642 = vmul.f32 %v641, %v640
    %v643 = vmul.f32 0.5, %v642
    %v644 = vsub.f32 1.5, %v643
    %v645 = vmul.f32 %v640, %v644
    %vm646 = vweird.f32 %v639
    %vm647 = vweird.f32 %v640
    %vm648 = vmor %vm646, %vm647
    %v649 = vsel %vm648, %v640, %v645
    %651 = vrot.lane.b32.xlu0 %v649, 120
    %v652 = vpop.permute.xlu0 %651
    %v654 = vmul.f32 %v628, %v652
    %656 = vrot.lane.b32.xlu0 %v517, 127
    %v657 = vpop.permute.xlu0 %656
    %660 = vrot.lane.b32.xlu0 %v520, 3
    %v661 = vpop.permute.xlu0 %660
    %664 = vrot.lane.b32.xlu0 %v578, 3
    %v665 = vpop.permute.xlu0 %664
    %668 = vrot.lane.b32.xlu0 %v605, 5
    %v669 = vpop.permute.xlu0 %668
    %672 = vrot.lane.b32.xlu0 %v654, 5
    %v673 = vpop.permute.xlu0 %672
    %v675 = vsel %vm410, %v480, %v493
    %vm676 = vcmask 15360
    %v677 = vsel %vm676, %v675, %v657
    %v678 = vsel %vm390, %v677, %v661
    %vm679 = vcmask 31744
    %v680 = vsel %vm679, %v678, %v665
    %vm681 = vcmask 39936
    %v682 = vsel %vm681, %v680, %v669
    %vm683 = vcmask 48128
    %v684 = vsel %vm683, %v682, %v673
    %v685 = vperm.slane %v384, 0
    %v686 = vsub.f32 %v684, %v685
    %v687 = vperm.slane %v384, 1
    %v688 = vmul.f32 %v686, %v687
    %689 = vrot.lane.b32.xlu0 %v371, 69
    %v690 = vpop.permute.xlu0 %689
    %692 = vrot.lane.b32.xlu0 %v371, 67
    %v693 = vpop.permute.xlu0 %692
    %696 = vrot.lane.b32.xlu0 %v688, 17
    %v697 = vpop.permute.xlu0 %696
    %700 = vrot.lane.b32.xlu0 %v684, 24
    %v701 = vpop.permute.xlu0 %700
    %v703 = vsel %vm681, %v383, %v690
    %vm704 = vcmask 89088
    %v705 = vsel %vm704, %v703, %v693
    %vm706 = vcmask 138240
    %v707 = vsel %vm706, %v705, %v697
    %vm708 = vcmask 195584
    %v709 = vsel %vm708, %v707, %v701
    %vm710 = vcmask 252928
    %v711 = vsel %vm710, %v709, 0.0
    %712 = vst [vmem:[%s12] sm:$0xff] %v711
    // Predicated region
    $region82: #{htautau_forward.1} parent=1 // pred_check
      _
    $region83: #{htautau_forward.1} parent=1 // pred_check_branch
      %714 = sbr.rel (0) target = $region85
    $region84: #{htautau_forward.1} parent=1 // pred_region
      _
    $region85: #{htautau_forward.1} parent=1 // pred_fallthru
      _
    // Predicated region
    $region86: #{htautau_forward.1} parent=1 // pred_check
      _
    $region87: #{htautau_forward.1} parent=1 // pred_check_branch
      %716 = sbr.rel (0) target = $region89
    $region88: #{htautau_forward.1} parent=1 // pred_region
      _
    $region89: #{htautau_forward.1} parent=1 // pred_fallthru
      _
    %717 = vsyncpa [#allocation3], 1
    %718 = vsyncpa [#allocation5], 1
    %719 = vsyncpa [#allocation8], 1
    %720 = vsyncpa [#allocation11], 1
    %721 = vsyncpa [#allocation14], 1

</llo_original>
